<compile_context>
chip_gen: v7x
topology: tpu7x:2x2x1
jax: 0.10.0
libtpu: 0.0.40
codegen_flags: <defaults>
</compile_context>

<pallas_src>
import jax
import jax.numpy as jnp
from jax.experimental import pallas as pl
from jax.experimental.pallas import tpu as pltpu


# ---------------------------------------------------------------------------
# Static dimensions
# ---------------------------------------------------------------------------
ENC_HIDDEN = 64          # encoder hidden width
LATENT_DIM = 32          # vqvae.encoder.enc[-1].out_features
EMBED_DIM = 8            # label_embed / action_embed width
POLICY_IN = LATENT_DIM + EMBED_DIM            # 40
CRITIC_IN = POLICY_IN + EMBED_DIM             # 48

POL_HID, VAL_HID, INT_HID = 128, 256, 64
POL_OFF, VAL_OFF, INT_OFF = 0, 128, 384
HID_TOT = 512            # 128 + 256 + 64, padded to a lane multiple
OUT_LANES = 128          # lane-dense output block: 0-1 logits, 2 value, 3-4 intent
FEAT_DIM = 2 * EMBED_DIM  # packed [label_feat | action_feat]


# ---------------------------------------------------------------------------
# Fused Pallas kernel: encoder + policy head + value head + intent head
# ---------------------------------------------------------------------------
def _agent_a_fused_kernel(x_ref, feat_ref, enc_ref, w1_ref, w2_ref, b_ref, out_ref):
    fin = enc_ref.shape[0] - ENC_HIDDEN   # static

    # Packed biases (one DMA): row0 = enc_b1, row1 = enc_b2, row2 = head layer-1
    # biases (lane-packed), row3 = head layer-2 biases (lane-packed).
    eb1 = b_ref[0:1, 0:ENC_HIDDEN]
    eb2 = b_ref[1:2, 0:LATENT_DIM]
    b1 = b_ref[2:3, :]
    b2 = b_ref[3:4, 0:OUT_LANES]

    # vqvae.encoder: Linear(fin,64) -> ReLU -> Linear(64,32)
    x = x_ref[...]                                                    # (Bp, fin)
    h = jnp.dot(x, enc_ref[0:fin, :], preferred_element_type=jnp.float32) + eb1
    h = jnp.maximum(h, 0.0)
    z_e = jnp.dot(h, enc_ref[fin:fin + ENC_HIDDEN, 0:LATENT_DIM],
                  preferred_element_type=jnp.float32) + eb2           # (Bp, 32)

    # Head layer-1 for all three heads, concat-free:
    #   hidden = z_e @ W1[z-rows] + [label|action] @ W1[embed-rows] + b1
    # lane layout of hidden: [0:128]=policy, [128:384]=value, [384:448]=intent.
    hid = (jnp.dot(z_e, w1_ref[0:LATENT_DIM, :],
                   preferred_element_type=jnp.float32)
           + jnp.dot(feat_ref[...], w1_ref[LATENT_DIM:LATENT_DIM + FEAT_DIM, :],
                     preferred_element_type=jnp.float32)
           + b1)
    hid = jnp.maximum(hid, 0.0)                                       # (Bp, 512)

    # Head layer-2 for all three heads in one block-diagonal matmul.
    # Lane-dense (Bp, 128) output: lanes 0-1 logits, lane 2 value, lanes 3-4 intent.
    out_ref[...] = jnp.dot(hid, w2_ref[...],
                           preferred_element_type=jnp.float32) + b2


# ---------------------------------------------------------------------------
# Parameters (deterministic, synthetic) and layout-only packing
# ---------------------------------------------------------------------------
def init_params(key, in_features):
    def lin(k, fan_in, fan_out):
        kw, kb = jax.random.split(k)
        w = jax.random.normal(kw, (fan_in, fan_out), jnp.float32) * 0.05
        b = jax.random.normal(kb, (1, fan_out), jnp.float32) * 0.05
        return w, b

    keys = jax.random.split(key, 10)
    p = {}
    p["enc_w1"], p["enc_b1"] = lin(keys[0], in_features, ENC_HIDDEN)
    p["enc_w2"], p["enc_b2"] = lin(keys[1], ENC_HIDDEN, LATENT_DIM)
    p["label_embed"] = jax.random.normal(keys[2], (10, EMBED_DIM), jnp.float32) * 0.05
    p["action_embed"] = jax.random.normal(keys[3], (2, EMBED_DIM), jnp.float32) * 0.05
    p["pol_w1"], p["pol_b1"] = lin(keys[4], POLICY_IN, POL_HID)
    p["pol_w2"], p["pol_b2"] = lin(keys[5], POL_HID, 2)
    p["val_w1"], p["val_b1"] = lin(keys[6], CRITIC_IN, VAL_HID)
    p["val_w2"], p["val_b2"] = lin(keys[7], VAL_HID, 1)
    p["int_w1"], p["int_b1"] = lin(keys[8], POLICY_IN, INT_HID)
    p["int_w2"], p["int_b2"] = lin(keys[9], INT_HID, 2)
    return p


def pack_params(p):
    """Pure layout rearrangement (no math): pack parameters into 4 DMA-friendly arrays."""
    f32 = jnp.float32
    fin = p["enc_w1"].shape[0]

    # Encoder weights stacked along rows: [enc_w1 ; enc_w2 padded to 64 lanes].
    ew2_pad = jnp.zeros((ENC_HIDDEN, ENC_HIDDEN), f32).at[:, :LATENT_DIM].set(p["enc_w2"])
    enc_pack = jnp.concatenate([p["enc_w1"].astype(f32), ew2_pad], axis=0)  # (fin+64, 64)

    # Head layer-1 weights, lane-packed per head, row-split by input source:
    #   rows 0:32  = z_e weights, rows 32:40 = label weights, rows 40:48 = action weights.
    w1 = jnp.zeros((LATENT_DIM + FEAT_DIM, HID_TOT), f32)
    w1 = w1.at[0:POLICY_IN, POL_OFF:POL_OFF + POL_HID].set(p["pol_w1"])
    w1 = w1.at[0:CRITIC_IN, VAL_OFF:VAL_OFF + VAL_HID].set(p["val_w1"])
    w1 = w1.at[0:POLICY_IN, INT_OFF:INT_OFF + INT_HID].set(p["int_w1"])

    # Head layer-2 as one block-diagonal matrix -> lane-dense 128-wide output.
    w2 = jnp.zeros((HID_TOT, OUT_LANES), f32)
    w2 = w2.at[POL_OFF:POL_OFF + POL_HID, 0:2].set(p["pol_w2"])
    w2 = w2.at[VAL_OFF:VAL_OFF + VAL_HID, 2:3].set(p["val_w2"])
    w2 = w2.at[INT_OFF:INT_OFF + INT_HID, 3:5].set(p["int_w2"])

    b1 = jnp.zeros((1, HID_TOT), f32)
    b1 = b1.at[:, POL_OFF:POL_OFF + POL_HID].set(p["pol_b1"])
    b1 = b1.at[:, VAL_OFF:VAL_OFF + VAL_HID].set(p["val_b1"])
    b1 = b1.at[:, INT_OFF:INT_OFF + INT_HID].set(p["int_b1"])

    b2 = jnp.zeros((1, OUT_LANES), f32)
    b2 = b2.at[:, 0:2].set(p["pol_b2"])
    b2 = b2.at[:, 2:3].set(p["val_b2"])
    b2 = b2.at[:, 3:5].set(p["int_b2"])

    biases = jnp.zeros((8, HID_TOT), f32)
    biases = biases.at[0, 0:ENC_HIDDEN].set(p["enc_b1"][0])
    biases = biases.at[1, 0:LATENT_DIM].set(p["enc_b2"][0])
    biases = biases.at[2, :].set(b1[0])
    biases = biases.at[3, 0:OUT_LANES].set(b2[0])

    return {
        "enc_pack": enc_pack,
        "w1_pack": w1,
        "w2_pack": w2,
        "bias_pack": biases,
        "label_embed": p["label_embed"],
        "action_embed": p["action_embed"],
    }


# ---------------------------------------------------------------------------
# Wrapper (forward pass with the same semantics as AgentA.forward)
# ---------------------------------------------------------------------------
def _run_fused(packed, x_flat, label_feat, act_feat):
    B, fin = x_flat.shape
    B_pad = max(8, ((B + 7) // 8) * 8)   # sublane-aligned batch

    feats = jnp.concatenate([label_feat, act_feat], axis=1)           # (B, 16)
    x_pad = jnp.zeros((B_pad, fin), jnp.float32).at[:B].set(x_flat)
    feats_pad = jnp.zeros((B_pad, FEAT_DIM), jnp.float32).at[:B].set(feats)

    vmem = pltpu.MemorySpace.VMEM
    out = pl.pallas_call(
        _agent_a_fused_kernel,
        out_shape=jax.ShapeDtypeStruct((B_pad, OUT_LANES), jnp.float32),
        in_specs=[pl.BlockSpec(memory_space=vmem)] * 6,   # whole arrays, no pipeline
        out_specs=pl.BlockSpec(memory_space=vmem),
    )(x_pad, feats_pad, packed["enc_pack"], packed["w1_pack"],
      packed["w2_pack"], packed["bias_pack"])

    logits = out[:B, 0:2]
    value = out[:B, 2]       # already squeezed, shape (B,)
    intent = out[:B, 3:5]
    return logits, value, intent


def agent_a_forward(packed, x, label, opponent_action=None, mode="policy"):
    B = x.shape[0]
    x_flat = x.reshape(B, -1).astype(jnp.float32)        # nn.Flatten over NCHW

    # Embedding lookups (tiny gathers) stay in plain-JAX glue.
    label_feat = packed["label_embed"][label]            # (B, 8)
    if mode == "policy" and opponent_action is not None:
        act_idx = opponent_action
    else:
        # PyTorch uses torch.tensor([0]); we broadcast the dummy action index
        # across the batch so the path also works for B > 1.
        act_idx = jnp.zeros((B,), jnp.int32)
    act_feat = packed["action_embed"][act_idx]           # (B, 8)

    logits, value, intent = _run_fused(packed, x_flat, label_feat, act_feat)

    if mode == "policy":
        return logits, value
    elif mode == "predict_own_intent":
        return intent
    else:
        raise NotImplementedError(f"Mode '{mode}' not implemented for AgentA.")


# ---------------------------------------------------------------------------
# Pure-JAX reference (mirrors the PyTorch forward) for a correctness check
# ---------------------------------------------------------------------------
def _reference(p, x, label, opponent_action):
    B = x.shape[0]
    xf = x.reshape(B, -1).astype(jnp.float32)
    h = jnp.maximum(xf @ p["enc_w1"] + p["enc_b1"], 0.0)
    z_e = h @ p["enc_w2"] + p["enc_b2"]
    base = jnp.concatenate([z_e, p["label_embed"][label]], axis=1)
    ph = jnp.maximum(base @ p["pol_w1"] + p["pol_b1"], 0.0)
    logits = ph @ p["pol_w2"] + p["pol_b2"]
    ci = jnp.concatenate([base, p["action_embed"][opponent_action]], axis=1)
    vh = jnp.maximum(ci @ p["val_w1"] + p["val_b1"], 0.0)
    value = (vh @ p["val_w2"] + p["val_b2"]).squeeze(-1)
    ih = jnp.maximum(base @ p["int_w1"] + p["int_b1"], 0.0)
    intent = ih @ p["int_w2"] + p["int_b2"]
    return logits, value, intent


if __name__ == "__main__":
    key = jax.random.PRNGKey(0)
    k_param, k_x, k_lbl, k_act = jax.random.split(key, 4)

    B, C, H, W = 2, 4, 16, 16                            # x: NCHW
    x = jax.random.normal(k_x, (B, C, H, W), jnp.float32)
    label = jax.random.randint(k_lbl, (B,), 0, 10, jnp.int32)
    opponent_action = jax.random.randint(k_act, (B,), 0, 2, jnp.int32)

    params = init_params(k_param, C * H * W)
    packed = pack_params(params)

    # mode='policy' (explicit opponent action)
    logits, value = agent_a_forward(packed, x, label, opponent_action, mode="policy")
    logits, value = jax.block_until_ready((logits, value))

    # mode='policy' with opponent_action=None (dummy action 0, broadcast over batch)
    logits_d, value_d = agent_a_forward(packed, x, label, None, mode="policy")
    logits_d, value_d = jax.block_until_ready((logits_d, value_d))

    # mode='predict_own_intent'
    intent = agent_a_forward(packed, x, label, mode="predict_own_intent")
    intent = jax.block_until_ready(intent)

    # Sanity checks against the pure-JAX reference.
    ref_logits, ref_value, ref_intent = _reference(params, x, label, opponent_action)
    _, ref_value_d, _ = _reference(params, x, label, jnp.zeros((B,), jnp.int32))

    assert logits.shape == (B, 2) and value.shape == (B,) and intent.shape == (B, 2)
    assert jnp.allclose(logits, ref_logits, atol=1e-4, rtol=1e-4)
    assert jnp.allclose(value, ref_value, atol=1e-4, rtol=1e-4)
    assert jnp.allclose(intent, ref_intent, atol=1e-4, rtol=1e-4)
    assert jnp.allclose(logits_d, ref_logits, atol=1e-4, rtol=1e-4)
    assert jnp.allclose(value_d, ref_value_d, atol=1e-4, rtol=1e-4)

    print("KERNEL_OK")
</pallas_src>

<mosaic_0001>
module attributes {stable_mosaic.version = 11 : i64} {
  func.func @_agent_a_fused_kernel(%arg0: memref<8x1024xf32, #tpu.memory_space<vmem>>, %arg1: memref<8x16xf32, #tpu.memory_space<vmem>>, %arg2: memref<1088x64xf32, #tpu.memory_space<vmem>>, %arg3: memref<48x512xf32, #tpu.memory_space<vmem>>, %arg4: memref<512x128xf32, #tpu.memory_space<vmem>>, %arg5: memref<8x512xf32, #tpu.memory_space<vmem>>, %arg6: memref<8x128xf32, #tpu.memory_space<vmem>>) attributes {dimension_semantics = [], scalar_prefetch = 0 : i64, scratch_operands = 0 : i64, tpu.core_type = #tpu.core_type<tc>} {
    %c0 = arith.constant 0 : index
    %c0_0 = arith.constant 0 : index
    %0 = vector.load %arg5[%c0, %c0_0] : memref<8x512xf32, #tpu.memory_space<vmem>>, vector<1x64xf32>
    %c1 = arith.constant 1 : index
    %c0_1 = arith.constant 0 : index
    %1 = vector.load %arg5[%c1, %c0_1] : memref<8x512xf32, #tpu.memory_space<vmem>>, vector<1x32xf32>
    %c2 = arith.constant 2 : index
    %c0_2 = arith.constant 0 : index
    %2 = vector.load %arg5[%c2, %c0_2] : memref<8x512xf32, #tpu.memory_space<vmem>>, vector<1x512xf32>
    %c3 = arith.constant 3 : index
    %c0_3 = arith.constant 0 : index
    %3 = vector.load %arg5[%c3, %c0_3] : memref<8x512xf32, #tpu.memory_space<vmem>>, vector<1x128xf32>
    %c0_4 = arith.constant 0 : index
    %c0_5 = arith.constant 0 : index
    %4 = vector.load %arg0[%c0_4, %c0_5] : memref<8x1024xf32, #tpu.memory_space<vmem>>, vector<8x1024xf32>
    %c0_6 = arith.constant 0 : index
    %c0_7 = arith.constant 0 : index
    %5 = vector.load %arg2[%c0_6, %c0_7] : memref<1088x64xf32, #tpu.memory_space<vmem>>, vector<1024x64xf32>
    %cst = arith.constant dense<0.000000e+00> : vector<8x64xf32>
    %6 = tpu.matmul %4, %5, %cst {dimension_numbers = #tpu.dot_dimension_numbers<[1], [0], [0], [1], [0, 0, 1, 1], [], []>} : vector<8x1024xf32>, vector<1024x64xf32>, vector<8x64xf32> -> vector<8x64xf32>
    %7 = vector.broadcast %0 : vector<1x64xf32> to vector<8x64xf32>
    %8 = arith.addf %6, %7 : vector<8x64xf32>
    %cst_8 = arith.constant 0.000000e+00 : f32
    %9 = vector.broadcast %cst_8 : f32 to vector<8x64xf32>
    %10 = arith.maximumf %8, %9 : vector<8x64xf32>
    %c1024 = arith.constant 1024 : index
    %c0_9 = arith.constant 0 : index
    %11 = vector.load %arg2[%c1024, %c0_9] : memref<1088x64xf32, #tpu.memory_space<vmem>>, vector<64x32xf32>
    %cst_10 = arith.constant dense<0.000000e+00> : vector<8x32xf32>
    %12 = tpu.matmul %10, %11, %cst_10 {dimension_numbers = #tpu.dot_dimension_numbers<[1], [0], [0], [1], [0, 0, 1, 1], [], []>} : vector<8x64xf32>, vector<64x32xf32>, vector<8x32xf32> -> vector<8x32xf32>
    %13 = vector.broadcast %1 : vector<1x32xf32> to vector<8x32xf32>
    %14 = arith.addf %12, %13 : vector<8x32xf32>
    %c0_11 = arith.constant 0 : index
    %c0_12 = arith.constant 0 : index
    %15 = vector.load %arg3[%c0_11, %c0_12] : memref<48x512xf32, #tpu.memory_space<vmem>>, vector<32x512xf32>
    %cst_13 = arith.constant dense<0.000000e+00> : vector<8x512xf32>
    %16 = tpu.matmul %14, %15, %cst_13 {dimension_numbers = #tpu.dot_dimension_numbers<[1], [0], [0], [1], [0, 0, 1, 1], [], []>} : vector<8x32xf32>, vector<32x512xf32>, vector<8x512xf32> -> vector<8x512xf32>
    %c0_14 = arith.constant 0 : index
    %c0_15 = arith.constant 0 : index
    %17 = vector.load %arg1[%c0_14, %c0_15] : memref<8x16xf32, #tpu.memory_space<vmem>>, vector<8x16xf32>
    %c32 = arith.constant 32 : index
    %c0_16 = arith.constant 0 : index
    %18 = vector.load %arg3[%c32, %c0_16] : memref<48x512xf32, #tpu.memory_space<vmem>>, vector<16x512xf32>
    %cst_17 = arith.constant dense<0.000000e+00> : vector<8x512xf32>
    %19 = tpu.matmul %17, %18, %cst_17 {dimension_numbers = #tpu.dot_dimension_numbers<[1], [0], [0], [1], [0, 0, 1, 1], [], []>} : vector<8x16xf32>, vector<16x512xf32>, vector<8x512xf32> -> vector<8x512xf32>
    %20 = arith.addf %16, %19 : vector<8x512xf32>
    %21 = vector.broadcast %2 : vector<1x512xf32> to vector<8x512xf32>
    %22 = arith.addf %20, %21 : vector<8x512xf32>
    %cst_18 = arith.constant 0.000000e+00 : f32
    %23 = vector.broadcast %cst_18 : f32 to vector<8x512xf32>
    %24 = arith.maximumf %22, %23 : vector<8x512xf32>
    %c0_19 = arith.constant 0 : index
    %c0_20 = arith.constant 0 : index
    %25 = vector.load %arg4[%c0_19, %c0_20] : memref<512x128xf32, #tpu.memory_space<vmem>>, vector<512x128xf32>
    %cst_21 = arith.constant dense<0.000000e+00> : vector<8x128xf32>
    %26 = tpu.matmul %24, %25, %cst_21 {dimension_numbers = #tpu.dot_dimension_numbers<[1], [0], [0], [1], [0, 0, 1, 1], [], []>} : vector<8x512xf32>, vector<512x128xf32>, vector<8x128xf32> -> vector<8x128xf32>
    %27 = vector.broadcast %3 : vector<1x128xf32> to vector<8x128xf32>
    %28 = arith.addf %26, %27 : vector<8x128xf32>
    %c0_22 = arith.constant 0 : index
    %c0_23 = arith.constant 0 : index
    %29 = vector.load %arg6[%c0_22, %c0_23] : memref<8x128xf32, #tpu.memory_space<vmem>>, vector<8x128xf32>
    tpu.vector_store %arg6[%c0_22, %c0_23], %28 {strides = array<i32>} : memref<8x128xf32, #tpu.memory_space<vmem>>, vector<8x128xf32>,
    return
  }
}

</mosaic_0001>

<llo_original>
// kernel: tpu_custom_call.1
$region0: #{tpu_custom_call.1}
  #allocation0 [shape = 'u32[]', space=smem, size = 0x4, offset = 0x4, fixed_abs, tag = 'smem constant byte address 0x4 - core index']
  #allocation1 [shape = 'u32[144,128]{1,0:T(1,128)}', space=vmem, size = 0x12000, scoped, tag = 'internal scratch']
  %s0 = inlined_call_operand.vmem [shape: f32[8,1024], index: 0, kind: input, shape index: {}]
  %s1 = inlined_call_operand.vmem [shape: f32[8,16], index: 1, kind: input, shape index: {}]
  %s2 = inlined_call_operand.vmem [shape: f32[1088,64], index: 2, kind: input, shape index: {}]
  %s3 = inlined_call_operand.vmem [shape: f32[48,512], index: 3, kind: input, shape index: {}]
  %s4 = inlined_call_operand.vmem [shape: f32[512,128], index: 4, kind: input, shape index: {}]
  %s5 = inlined_call_operand.vmem [shape: f32[8,512], index: 5, kind: input, shape index: {}]
  %s6 = inlined_call_operand.hbm [shape: f32[8,128], index: 6, kind: output, shape index: {}]
  %s7 = sld [smem:[#allocation0]]
  $region34: #{tpu_custom_call.1} parent=0
    _
  %s9 = ssub.s32 1, %s7
  %s10 = scalar_select 0, %s9, %s7
  $region1: #{tpu_custom_call.1} parent=0
    #allocation2 [shape = 'u8[4096]{0}', space=vmem, size = 0x1000, scoped, tag = 'output window, operand 0, single buffered']
    #allocation3 [shape = 's32[1]{0}', space=sflag, size = 0x4, scoped, tag = 'scoped memory for tpu_custom_call.1']
    %11 = vsyncpa [#allocation3], 0
    // Predicated region
    $region2: #{tpu_custom_call.1} parent=1 // pred_check
      _
    $region3: #{tpu_custom_call.1} parent=1 // pred_check_branch
      %13 = sbr.rel (0) target = $region5
    $region4: #{tpu_custom_call.1} parent=1 // pred_region
      _
    $region5: #{tpu_custom_call.1} parent=1 // pred_fallthru
      _
    // Predicated region
    $region6: #{tpu_custom_call.1} parent=1 // pred_check
      _
    $region7: #{tpu_custom_call.1} parent=1 // pred_check_branch
      %15 = sbr.rel (0) target = $region9
    $region8: #{tpu_custom_call.1} parent=1 // pred_region
      _
    $region9: #{tpu_custom_call.1} parent=1 // pred_fallthru
      _
    // Predicated region
    $region10: #{tpu_custom_call.1} parent=1 // pred_check
      _
    $region11: #{tpu_custom_call.1} parent=1 // pred_check_branch
      %17 = sbr.rel (0) target = $region13
    $region12: #{tpu_custom_call.1} parent=1 // pred_region
      _
    $region13: #{tpu_custom_call.1} parent=1 // pred_fallthru
      _
    // Predicated region
    $region14: #{tpu_custom_call.1} parent=1 // pred_check
      _
    $region15: #{tpu_custom_call.1} parent=1 // pred_check_branch
      %19 = sbr.rel (0) target = $region17
    $region16: #{tpu_custom_call.1} parent=1 // pred_region
      _
    $region17: #{tpu_custom_call.1} parent=1 // pred_fallthru
      _
    // Predicated region
    $region18: #{tpu_custom_call.1} parent=1 // pred_check
      _
    $region19: #{tpu_custom_call.1} parent=1 // pred_check_branch
      %21 = sbr.rel (0) target = $region21
    $region20: #{tpu_custom_call.1} parent=1 // pred_region
      _
    $region21: #{tpu_custom_call.1} parent=1 // pred_fallthru
      _
    // Predicated region
    $region22: #{tpu_custom_call.1} parent=1 // pred_check
      _
    $region23: #{tpu_custom_call.1} parent=1 // pred_check_branch
      %23 = sbr.rel (0) target = $region25
    $region24: #{tpu_custom_call.1} parent=1 // pred_region
      _
    $region25: #{tpu_custom_call.1} parent=1 // pred_fallthru
      _
    %v24 = vld [vmem:[%s5] ss:$0 sm:$0xff]
    %v25 = vld [vmem:[%s5 + $0x1] ss:$0 sm:$0xff]
    %s26 = scalar_lea.vmem %s5, 2
    %v27 = vld [vmem:[%s26] ss:$8 sm:$0xf]
    %v28 = vld [vmem:[%s5 + $0x3] ss:$0 sm:$0xff]
    %v29 = vld [vmem:[%s0] sm:$0xff]
    %v30 = vld [vmem:[%s0 + $0x8] sm:$0xff]
    %v31 = vld [vmem:[%s0 + $0x10] sm:$0xff]
    %v32 = vld [vmem:[%s0 + $0x18] sm:$0xff]
    %v33 = vld [vmem:[%s0 + $0x20] sm:$0xff]
    %v34 = vld [vmem:[%s0 + $0x28] sm:$0xff]
    %v35 = vld [vmem:[%s0 + $0x30] sm:$0xff]
    %v36 = vld [vmem:[%s0 + $0x38] sm:$0xff]
    %v37 = vld [vmem:[%s2] sm:$0xff]
    %v38 = vld [vmem:[%s2 + $0x8] sm:$0xff]
    %v39 = vld [vmem:[%s2 + $0x10] sm:$0xff]
    %v40 = vld [vmem:[%s2 + $0x18] sm:$0xff]
    %v41 = vld [vmem:[%s2 + $0x20] sm:$0xff]
    %v42 = vld [vmem:[%s2 + $0x28] sm:$0xff]
    %v43 = vld [vmem:[%s2 + $0x30] sm:$0xff]
    %v44 = vld [vmem:[%s2 + $0x38] sm:$0xff]
    %v45 = vld [vmem:[%s2 + $0x40] sm:$0xff]
    %v46 = vld [vmem:[%s2 + $0x48] sm:$0xff]
    %v47 = vld [vmem:[%s2 + $0x50] sm:$0xff]
    %v48 = vld [vmem:[%s2 + $0x58] sm:$0xff]
    %v49 = vld [vmem:[%s2 + $0x60] sm:$0xff]
    %v50 = vld [vmem:[%s2 + $0x68] sm:$0xff]
    %v51 = vld [vmem:[%s2 + $0x70] sm:$0xff]
    %v52 = vld [vmem:[%s2 + $0x78] sm:$0xff]
    %v53 = vld [vmem:[%s2 + $0x80] sm:$0xff]
    %v54 = vld [vmem:[%s2 + $0x88] sm:$0xff]
    %v55 = vld [vmem:[%s2 + $0x90] sm:$0xff]
    %v56 = vld [vmem:[%s2 + $0x98] sm:$0xff]
    %v57 = vld [vmem:[%s2 + $0xa0] sm:$0xff]
    %v58 = vld [vmem:[%s2 + $0xa8] sm:$0xff]
    %v59 = vld [vmem:[%s2 + $0xb0] sm:$0xff]
    %v60 = vld [vmem:[%s2 + $0xb8] sm:$0xff]
    %v61 = vld [vmem:[%s2 + $0xc0] sm:$0xff]
    %v62 = vld [vmem:[%s2 + $0xc8] sm:$0xff]
    %v63 = vld [vmem:[%s2 + $0xd0] sm:$0xff]
    %v64 = vld [vmem:[%s2 + $0xd8] sm:$0xff]
    %v65 = vld [vmem:[%s2 + $0xe0] sm:$0xff]
    %v66 = vld [vmem:[%s2 + $0xe8] sm:$0xff]
    %v67 = vld [vmem:[%s2 + $0xf0] sm:$0xff]
    %v68 = vld [vmem:[%s2 + $0xf8] sm:$0xff]
    %v69 = vld [vmem:[%s2 + $0x100] sm:$0xff]
    %v70 = vld [vmem:[%s2 + $0x108] sm:$0xff]
    %v71 = vld [vmem:[%s2 + $0x110] sm:$0xff]
    %v72 = vld [vmem:[%s2 + $0x118] sm:$0xff]
    %v73 = vld [vmem:[%s2 + $0x120] sm:$0xff]
    %v74 = vld [vmem:[%s2 + $0x128] sm:$0xff]
    %v75 = vld [vmem:[%s2 + $0x130] sm:$0xff]
    %v76 = vld [vmem:[%s2 + $0x138] sm:$0xff]
    %v77 = vld [vmem:[%s2 + $0x140] sm:$0xff]
    %v78 = vld [vmem:[%s2 + $0x148] sm:$0xff]
    %v79 = vld [vmem:[%s2 + $0x150] sm:$0xff]
    %v80 = vld [vmem:[%s2 + $0x158] sm:$0xff]
    %v81 = vld [vmem:[%s2 + $0x160] sm:$0xff]
    %v82 = vld [vmem:[%s2 + $0x168] sm:$0xff]
    %v83 = vld [vmem:[%s2 + $0x170] sm:$0xff]
    %v84 = vld [vmem:[%s2 + $0x178] sm:$0xff]
    %v85 = vld [vmem:[%s2 + $0x180] sm:$0xff]
    %v86 = vld [vmem:[%s2 + $0x188] sm:$0xff]
    %v87 = vld [vmem:[%s2 + $0x190] sm:$0xff]
    %v88 = vld [vmem:[%s2 + $0x198] sm:$0xff]
    %v89 = vld [vmem:[%s2 + $0x1a0] sm:$0xff]
    %v90 = vld [vmem:[%s2 + $0x1a8] sm:$0xff]
    %v91 = vld [vmem:[%s2 + $0x1b0] sm:$0xff]
    %v92 = vld [vmem:[%s2 + $0x1b8] sm:$0xff]
    %v93 = vld [vmem:[%s2 + $0x1c0] sm:$0xff]
    %v94 = vld [vmem:[%s2 + $0x1c8] sm:$0xff]
    %v95 = vld [vmem:[%s2 + $0x1d0] sm:$0xff]
    %v96 = vld [vmem:[%s2 + $0x1d8] sm:$0xff]
    %v97 = vld [vmem:[%s2 + $0x1e0] sm:$0xff]
    %v98 = vld [vmem:[%s2 + $0x1e8] sm:$0xff]
    %v99 = vld [vmem:[%s2 + $0x1f0] sm:$0xff]
    %v100 = vld [vmem:[%s2 + $0x1f8] sm:$0xff]
    %v101 = vld [vmem:[%s2 + $0x200] sm:$0xff]
    %v102 = vld [vmem:[%s2 + $0x208] sm:$0xff]
    %v103 = vld [vmem:[%s2 + $0x210] sm:$0xff]
    %v104 = vld [vmem:[%s2 + $0x218] sm:$0xff]
    %v105 = vld [vmem:[%s2 + $0x220] sm:$0xff]
    %v106 = vld [vmem:[%s2 + $0x228] sm:$0xff]
    %v107 = vld [vmem:[%s2 + $0x230] sm:$0xff]
    %v108 = vld [vmem:[%s2 + $0x238] sm:$0xff]
    %v109 = vld [vmem:[%s2 + $0x240] sm:$0xff]
    %v110 = vld [vmem:[%s2 + $0x248] sm:$0xff]
    %v111 = vld [vmem:[%s2 + $0x250] sm:$0xff]
    %v112 = vld [vmem:[%s2 + $0x258] sm:$0xff]
    %v113 = vld [vmem:[%s2 + $0x260] sm:$0xff]
    %v114 = vld [vmem:[%s2 + $0x268] sm:$0xff]
    %v115 = vld [vmem:[%s2 + $0x270] sm:$0xff]
    %v116 = vld [vmem:[%s2 + $0x278] sm:$0xff]
    %v117 = vld [vmem:[%s2 + $0x280] sm:$0xff]
    %v118 = vld [vmem:[%s2 + $0x288] sm:$0xff]
    %v119 = vld [vmem:[%s2 + $0x290] sm:$0xff]
    %v120 = vld [vmem:[%s2 + $0x298] sm:$0xff]
    %v121 = vld [vmem:[%s2 + $0x2a0] sm:$0xff]
    %v122 = vld [vmem:[%s2 + $0x2a8] sm:$0xff]
    %v123 = vld [vmem:[%s2 + $0x2b0] sm:$0xff]
    %v124 = vld [vmem:[%s2 + $0x2b8] sm:$0xff]
    %v125 = vld [vmem:[%s2 + $0x2c0] sm:$0xff]
    %v126 = vld [vmem:[%s2 + $0x2c8] sm:$0xff]
    %v127 = vld [vmem:[%s2 + $0x2d0] sm:$0xff]
    %v128 = vld [vmem:[%s2 + $0x2d8] sm:$0xff]
    %v129 = vld [vmem:[%s2 + $0x2e0] sm:$0xff]
    %v130 = vld [vmem:[%s2 + $0x2e8] sm:$0xff]
    %v131 = vld [vmem:[%s2 + $0x2f0] sm:$0xff]
    %v132 = vld [vmem:[%s2 + $0x2f8] sm:$0xff]
    %v133 = vld [vmem:[%s2 + $0x300] sm:$0xff]
    %v134 = vld [vmem:[%s2 + $0x308] sm:$0xff]
    %v135 = vld [vmem:[%s2 + $0x310] sm:$0xff]
    %v136 = vld [vmem:[%s2 + $0x318] sm:$0xff]
    %v137 = vld [vmem:[%s2 + $0x320] sm:$0xff]
    %v138 = vld [vmem:[%s2 + $0x328] sm:$0xff]
    %v139 = vld [vmem:[%s2 + $0x330] sm:$0xff]
    %v140 = vld [vmem:[%s2 + $0x338] sm:$0xff]
    %v141 = vld [vmem:[%s2 + $0x340] sm:$0xff]
    %v142 = vld [vmem:[%s2 + $0x348] sm:$0xff]
    %v143 = vld [vmem:[%s2 + $0x350] sm:$0xff]
    %v144 = vld [vmem:[%s2 + $0x358] sm:$0xff]
    %v145 = vld [vmem:[%s2 + $0x360] sm:$0xff]
    %v146 = vld [vmem:[%s2 + $0x368] sm:$0xff]
    %v147 = vld [vmem:[%s2 + $0x370] sm:$0xff]
    %v148 = vld [vmem:[%s2 + $0x378] sm:$0xff]
    %v149 = vld [vmem:[%s2 + $0x380] sm:$0xff]
    %v150 = vld [vmem:[%s2 + $0x388] sm:$0xff]
    %v151 = vld [vmem:[%s2 + $0x390] sm:$0xff]
    %v152 = vld [vmem:[%s2 + $0x398] sm:$0xff]
    %v153 = vld [vmem:[%s2 + $0x3a0] sm:$0xff]
    %v154 = vld [vmem:[%s2 + $0x3a8] sm:$0xff]
    %v155 = vld [vmem:[%s2 + $0x3b0] sm:$0xff]
    %v156 = vld [vmem:[%s2 + $0x3b8] sm:$0xff]
    %v157 = vld [vmem:[%s2 + $0x3c0] sm:$0xff]
    %v158 = vld [vmem:[%s2 + $0x3c8] sm:$0xff]
    %v159 = vld [vmem:[%s2 + $0x3d0] sm:$0xff]
    %v160 = vld [vmem:[%s2 + $0x3d8] sm:$0xff]
    %v161 = vld [vmem:[%s2 + $0x3e0] sm:$0xff]
    %v162 = vld [vmem:[%s2 + $0x3e8] sm:$0xff]
    %v163 = vld [vmem:[%s2 + $0x3f0] sm:$0xff]
    %v164 = vld [vmem:[%s2 + $0x3f8] sm:$0xff]
    %165 = vmatprep.subr.mxu0 0.0
    %166 = vmatpush1.msra.mxu0 %v37
    %167 = vmatprep.subr.mxu0 0.0
    %168 = vmatpush1.msra.mxu0 %v38
    %169 = vmatprep.subr.mxu0 0.0
    %170 = vmatpush1.msra.mxu0 %v39
    %171 = vmatprep.subr.mxu0 0.0
    %172 = vmatpush1.msra.mxu0 %v40
    %173 = vmatprep.subr.mxu0 0.0
    %174 = vmatpush1.msra.mxu0 %v41
    %175 = vmatprep.subr.mxu0 0.0
    %176 = vmatpush1.msra.mxu0 %v42
    %177 = vmatprep.subr.mxu0 0.0
    %178 = vmatpush1.msra.mxu0 %v43
    %179 = vmatprep.subr.mxu0 0.0
    %180 = vmatpush1.msra.mxu0 %v44
    %181 = vmatprep.subr.mxu0 0.0
    %182 = vmatpush1.msra.mxu0 %v45
    %183 = vmatprep.subr.mxu0 0.0
    %184 = vmatpush1.msra.mxu0 %v46
    %185 = vmatprep.subr.mxu0 0.0
    %186 = vmatpush1.msra.mxu0 %v47
    %187 = vmatprep.subr.mxu0 0.0
    %188 = vmatpush1.msra.mxu0 %v48
    %189 = vmatprep.subr.mxu0 0.0
    %190 = vmatpush1.msra.mxu0 %v49
    %191 = vmatprep.subr.mxu0 0.0
    %192 = vmatpush1.msra.mxu0 %v50
    %193 = vmatprep.subr.mxu0 0.0
    %194 = vmatpush1.msra.mxu0 %v51
    %195 = vmatprep.subr.mxu0 0.0
    %196 = vmatpush1.msra.mxu0 %v52
    %197 = vmatprep.subr.mxu0 0.0
    %198 = vmatpush1.msra.mxu0 %v53
    %199 = vmatprep.subr.mxu0 0.0
    %200 = vmatpush1.msra.mxu0 %v54
    %201 = vmatprep.subr.mxu0 0.0
    %202 = vmatpush1.msra.mxu0 %v55
    %203 = vmatprep.subr.mxu0 0.0
    %204 = vmatpush1.msra.mxu0 %v56
    %205 = vmatprep.subr.mxu0 0.0
    %206 = vmatpush1.msra.mxu0 %v57
    %207 = vmatprep.subr.mxu0 0.0
    %208 = vmatpush1.msra.mxu0 %v58
    %209 = vmatprep.subr.mxu0 0.0
    %210 = vmatpush1.msra.mxu0 %v59
    %211 = vmatprep.subr.mxu0 0.0
    %212 = vmatpush1.msra.mxu0 %v60
    %213 = vmatprep.subr.mxu0 0.0
    %214 = vmatpush1.msra.mxu0 %v61
    %215 = vmatprep.subr.mxu0 0.0
    %216 = vmatpush1.msra.mxu0 %v62
    %217 = vmatprep.subr.mxu0 0.0
    %218 = vmatpush1.msra.mxu0 %v63
    %219 = vmatprep.subr.mxu0 0.0
    %220 = vmatpush1.msra.mxu0 %v64
    %221 = vmatprep.subr.mxu0 0.0
    %222 = vmatpush1.msra.mxu0 %v65
    %223 = vmatprep.subr.mxu0 0.0
    %224 = vmatpush1.msra.mxu0 %v66
    %225 = vmatprep.subr.mxu0 0.0
    %226 = vmatpush1.msra.mxu0 %v67
    %227 = vmatprep.subr.mxu0 0.0
    %228 = vmatpush1.msra.mxu0 %v68
    %229 = vmatprep.mubr.f32.mxu0 %v30
    %230 = vmatmul.mubr.f32.gmra.mrb[0].mxu0 %v29
    %v231 = vpop.f32.mrb[0].mxu0
    %v232 = vadd.f32 %v24, %v231
    %v233 = vpop.f32.mrb[0].mxu0
    %234 = vdwg.mxu0
    %235 = vmatprep.subr.mxu0 0.0
    %236 = vmatpush1.msra.mxu0 %v69
    %237 = vmatprep.subr.mxu0 0.0
    %238 = vmatpush1.msra.mxu0 %v70
    %239 = vmatprep.subr.mxu0 0.0
    %240 = vmatpush1.msra.mxu0 %v71
    %241 = vmatprep.subr.mxu0 0.0
    %242 = vmatpush1.msra.mxu0 %v72
    %243 = vmatprep.subr.mxu0 0.0
    %244 = vmatpush1.msra.mxu0 %v73
    %245 = vmatprep.subr.mxu0 0.0
    %246 = vmatpush1.msra.mxu0 %v74
    %247 = vmatprep.subr.mxu0 0.0
    %248 = vmatpush1.msra.mxu0 %v75
    %249 = vmatprep.subr.mxu0 0.0
    %250 = vmatpush1.msra.mxu0 %v76
    %251 = vmatprep.subr.mxu0 0.0
    %252 = vmatpush1.msra.mxu0 %v77
    %253 = vmatprep.subr.mxu0 0.0
    %254 = vmatpush1.msra.mxu0 %v78
    %255 = vmatprep.subr.mxu0 0.0
    %256 = vmatpush1.msra.mxu0 %v79
    %257 = vmatprep.subr.mxu0 0.0
    %258 = vmatpush1.msra.mxu0 %v80
    %259 = vmatprep.subr.mxu0 0.0
    %260 = vmatpush1.msra.mxu0 %v81
    %261 = vmatprep.subr.mxu0 0.0
    %262 = vmatpush1.msra.mxu0 %v82
    %263 = vmatprep.subr.mxu0 0.0
    %264 = vmatpush1.msra.mxu0 %v83
    %265 = vmatprep.subr.mxu0 0.0
    %266 = vmatpush1.msra.mxu0 %v84
    %267 = vmatprep.subr.mxu0 0.0
    %268 = vmatpush1.msra.mxu0 %v85
    %269 = vmatprep.subr.mxu0 0.0
    %270 = vmatpush1.msra.mxu0 %v86
    %271 = vmatprep.subr.mxu0 0.0
    %272 = vmatpush1.msra.mxu0 %v87
    %273 = vmatprep.subr.mxu0 0.0
    %274 = vmatpush1.msra.mxu0 %v88
    %275 = vmatprep.subr.mxu0 0.0
    %276 = vmatpush1.msra.mxu0 %v89
    %277 = vmatprep.subr.mxu0 0.0
    %278 = vmatpush1.msra.mxu0 %v90
    %279 = vmatprep.subr.mxu0 0.0
    %280 = vmatpush1.msra.mxu0 %v91
    %281 = vmatprep.subr.mxu0 0.0
    %282 = vmatpush1.msra.mxu0 %v92
    %283 = vmatprep.subr.mxu0 0.0
    %284 = vmatpush1.msra.mxu0 %v93
    %285 = vmatprep.subr.mxu0 0.0
    %286 = vmatpush1.msra.mxu0 %v94
    %287 = vmatprep.subr.mxu0 0.0
    %288 = vmatpush1.msra.mxu0 %v95
    %289 = vmatprep.subr.mxu0 0.0
    %290 = vmatpush1.msra.mxu0 %v96
    %291 = vmatprep.subr.mxu0 0.0
    %292 = vmatpush1.msra.mxu0 %v97
    %293 = vmatprep.subr.mxu0 0.0
    %294 = vmatpush1.msra.mxu0 %v98
    %295 = vmatprep.subr.mxu0 0.0
    %296 = vmatpush1.msra.mxu0 %v99
    %297 = vmatprep.subr.mxu0 0.0
    %298 = vmatpush1.msra.mxu0 %v100
    %299 = vmatprep.mubr.f32.mxu0 %v32
    %300 = vmatmul.mubr.f32.gmra.mrb[0].mxu0 %v31
    %v301 = vpop.f32.mrb[0].mxu0
    %v302 = vadd.f32 %v232, %v301
    %v303 = vpop.f32.mrb[0].mxu0
    %304 = vdwg.mxu0
    %305 = vmatprep.subr.mxu0 0.0
    %306 = vmatpush1.msra.mxu0 %v101
    %307 = vmatprep.subr.mxu0 0.0
    %308 = vmatpush1.msra.mxu0 %v102
    %309 = vmatprep.subr.mxu0 0.0
    %310 = vmatpush1.msra.mxu0 %v103
    %311 = vmatprep.subr.mxu0 0.0
    %312 = vmatpush1.msra.mxu0 %v104
    %313 = vmatprep.subr.mxu0 0.0
    %314 = vmatpush1.msra.mxu0 %v105
    %315 = vmatprep.subr.mxu0 0.0
    %316 = vmatpush1.msra.mxu0 %v106
    %317 = vmatprep.subr.mxu0 0.0
    %318 = vmatpush1.msra.mxu0 %v107
    %319 = vmatprep.subr.mxu0 0.0
    %320 = vmatpush1.msra.mxu0 %v108
    %321 = vmatprep.subr.mxu0 0.0
    %322 = vmatpush1.msra.mxu0 %v109
    %323 = vmatprep.subr.mxu0 0.0
    %324 = vmatpush1.msra.mxu0 %v110
    %325 = vmatprep.subr.mxu0 0.0
    %326 = vmatpush1.msra.mxu0 %v111
    %327 = vmatprep.subr.mxu0 0.0
    %328 = vmatpush1.msra.mxu0 %v112
    %329 = vmatprep.subr.mxu0 0.0
    %330 = vmatpush1.msra.mxu0 %v113
    %331 = vmatprep.subr.mxu0 0.0
    %332 = vmatpush1.msra.mxu0 %v114
    %333 = vmatprep.subr.mxu0 0.0
    %334 = vmatpush1.msra.mxu0 %v115
    %335 = vmatprep.subr.mxu0 0.0
    %336 = vmatpush1.msra.mxu0 %v116
    %337 = vmatprep.subr.mxu0 0.0
    %338 = vmatpush1.msra.mxu0 %v117
    %339 = vmatprep.subr.mxu0 0.0
    %340 = vmatpush1.msra.mxu0 %v118
    %341 = vmatprep.subr.mxu0 0.0
    %342 = vmatpush1.msra.mxu0 %v119
    %343 = vmatprep.subr.mxu0 0.0
    %344 = vmatpush1.msra.mxu0 %v120
    %345 = vmatprep.subr.mxu0 0.0
    %346 = vmatpush1.msra.mxu0 %v121
    %347 = vmatprep.subr.mxu0 0.0
    %348 = vmatpush1.msra.mxu0 %v122
    %349 = vmatprep.subr.mxu0 0.0
    %350 = vmatpush1.msra.mxu0 %v123
    %351 = vmatprep.subr.mxu0 0.0
    %352 = vmatpush1.msra.mxu0 %v124
    %353 = vmatprep.subr.mxu0 0.0
    %354 = vmatpush1.msra.mxu0 %v125
    %355 = vmatprep.subr.mxu0 0.0
    %356 = vmatpush1.msra.mxu0 %v126
    %357 = vmatprep.subr.mxu0 0.0
    %358 = vmatpush1.msra.mxu0 %v127
    %359 = vmatprep.subr.mxu0 0.0
    %360 = vmatpush1.msra.mxu0 %v128
    %361 = vmatprep.subr.mxu0 0.0
    %362 = vmatpush1.msra.mxu0 %v129
    %363 = vmatprep.subr.mxu0 0.0
    %364 = vmatpush1.msra.mxu0 %v130
    %365 = vmatprep.subr.mxu0 0.0
    %366 = vmatpush1.msra.mxu0 %v131
    %367 = vmatprep.subr.mxu0 0.0
    %368 = vmatpush1.msra.mxu0 %v132
    %369 = vmatprep.mubr.f32.mxu0 %v34
    %370 = vmatmul.mubr.f32.gmra.mrb[0].mxu0 %v33
    %v371 = vpop.f32.mrb[0].mxu0
    %v372 = vadd.f32 %v302, %v371
    %v373 = vpop.f32.mrb[0].mxu0
    %374 = vdwg.mxu0
    %375 = vmatprep.subr.mxu0 0.0
    %376 = vmatpush1.msra.mxu0 %v133
    %377 = vmatprep.subr.mxu0 0.0
    %378 = vmatpush1.msra.mxu0 %v134
    %379 = vmatprep.subr.mxu0 0.0
    %380 = vmatpush1.msra.mxu0 %v135
    %381 = vmatprep.subr.mxu0 0.0
    %382 = vmatpush1.msra.mxu0 %v136
    %383 = vmatprep.subr.mxu0 0.0
    %384 = vmatpush1.msra.mxu0 %v137
    %385 = vmatprep.subr.mxu0 0.0
    %386 = vmatpush1.msra.mxu0 %v138
    %387 = vmatprep.subr.mxu0 0.0
    %388 = vmatpush1.msra.mxu0 %v139
    %389 = vmatprep.subr.mxu0 0.0
    %390 = vmatpush1.msra.mxu0 %v140
    %391 = vmatprep.subr.mxu0 0.0
    %392 = vmatpush1.msra.mxu0 %v141
    %393 = vmatprep.subr.mxu0 0.0
    %394 = vmatpush1.msra.mxu0 %v142
    %395 = vmatprep.subr.mxu0 0.0
    %396 = vmatpush1.msra.mxu0 %v143
    %397 = vmatprep.subr.mxu0 0.0
    %398 = vmatpush1.msra.mxu0 %v144
    %399 = vmatprep.subr.mxu0 0.0
    %400 = vmatpush1.msra.mxu0 %v145
    %401 = vmatprep.subr.mxu0 0.0
    %402 = vmatpush1.msra.mxu0 %v146
    %403 = vmatprep.subr.mxu0 0.0
    %404 = vmatpush1.msra.mxu0 %v147
    %405 = vmatprep.subr.mxu0 0.0
    %406 = vmatpush1.msra.mxu0 %v148
    %407 = vmatprep.subr.mxu0 0.0
    %408 = vmatpush1.msra.mxu0 %v149
    %409 = vmatprep.subr.mxu0 0.0
    %410 = vmatpush1.msra.mxu0 %v150
    %411 = vmatprep.subr.mxu0 0.0
    %412 = vmatpush1.msra.mxu0 %v151
    %413 = vmatprep.subr.mxu0 0.0
    %414 = vmatpush1.msra.mxu0 %v152
    %415 = vmatprep.subr.mxu0 0.0
    %416 = vmatpush1.msra.mxu0 %v153
    %417 = vmatprep.subr.mxu0 0.0
    %418 = vmatpush1.msra.mxu0 %v154
    %419 = vmatprep.subr.mxu0 0.0
    %420 = vmatpush1.msra.mxu0 %v155
    %421 = vmatprep.subr.mxu0 0.0
    %422 = vmatpush1.msra.mxu0 %v156
    %423 = vmatprep.subr.mxu0 0.0
    %424 = vmatpush1.msra.mxu0 %v157
    %425 = vmatprep.subr.mxu0 0.0
    %426 = vmatpush1.msra.mxu0 %v158
    %427 = vmatprep.subr.mxu0 0.0
    %428 = vmatpush1.msra.mxu0 %v159
    %429 = vmatprep.subr.mxu0 0.0
    %430 = vmatpush1.msra.mxu0 %v160
    %431 = vmatprep.subr.mxu0 0.0
    %432 = vmatpush1.msra.mxu0 %v161
    %433 = vmatprep.subr.mxu0 0.0
    %434 = vmatpush1.msra.mxu0 %v162
    %435 = vmatprep.subr.mxu0 0.0
    %436 = vmatpush1.msra.mxu0 %v163
    %437 = vmatprep.subr.mxu0 0.0
    %438 = vmatpush1.msra.mxu0 %v164
    %439 = vmatprep.mubr.f32.mxu0 %v36
    %440 = vmatmul.mubr.f32.gmra.mrb[0].mxu0 %v35
    %v441 = vpop.f32.mrb[0].mxu0
    %v442 = vadd.f32 %v372, %v441
    %v443 = vpop.f32.mrb[0].mxu0
    %444 = vdwg.mxu0
    %v445 = vmax.f32 %v442, 0.0
    %v446 = vld [vmem:[%s2 + $0x400] sm:$0xff]
    %v447 = vld [vmem:[%s2 + $0x408] sm:$0xff]
    %v448 = vld [vmem:[%s2 + $0x410] sm:$0xff]
    %v449 = vld [vmem:[%s2 + $0x418] sm:$0xff]
    %v450 = vld [vmem:[%s2 + $0x420] sm:$0xff]
    %v451 = vld [vmem:[%s2 + $0x428] sm:$0xff]
    %v452 = vld [vmem:[%s2 + $0x430] sm:$0xff]
    %v453 = vld [vmem:[%s2 + $0x438] sm:$0xff]
    %vm454 = vcmask 523264
    %v456 = vsel %vm454, %v445, 0
    %458 = vmatprep.subr.mxu0 0.0
    %459 = vmatpush1.msra.mxu0 %v446
    %460 = vmatprep.subr.mxu0 0.0
    %461 = vmatpush1.msra.mxu0 %v447
    %462 = vmatprep.subr.mxu0 0.0
    %463 = vmatpush1.msra.mxu0 %v448
    %464 = vmatprep.subr.mxu0 0.0
    %465 = vmatpush1.msra.mxu0 %v449
    %466 = vmatprep.subr.mxu0 0.0
    %467 = vmatpush1.msra.mxu0 %v450
    %468 = vmatprep.subr.mxu0 0.0
    %469 = vmatpush1.msra.mxu0 %v451
    %470 = vmatprep.subr.mxu0 0.0
    %471 = vmatpush1.msra.mxu0 %v452
    %472 = vmatprep.subr.mxu0 0.0
    %473 = vmatpush1.msra.mxu0 %v453
    %474 = vmatprep.subr.mxu0 0.0
    %475 = vmatpush1.msra.mxu0 0.0
    %476 = vmatprep.subr.mxu0 0.0
    %477 = vmatpush1.msra.mxu0 0.0
    %478 = vmatprep.subr.mxu0 0.0
    %479 = vmatpush1.msra.mxu0 0.0
    %480 = vmatprep.subr.mxu0 0.0
    %481 = vmatpush1.msra.mxu0 0.0
    %482 = vmatprep.subr.mxu0 0.0
    %483 = vmatpush1.msra.mxu0 0.0
    %484 = vmatprep.subr.mxu0 0.0
    %485 = vmatpush1.msra.mxu0 0.0
    %486 = vmatprep.subr.mxu0 0.0
    %487 = vmatpush1.msra.mxu0 0.0
    %488 = vmatprep.subr.mxu0 0.0
    %489 = vmatpush1.msra.mxu0 0.0
    %490 = vmatprep.subr.mxu0 0.0
    %491 = vmatpush1.msra.mxu0 0.0
    %492 = vmatprep.subr.mxu0 0.0
    %493 = vmatpush1.msra.mxu0 0.0
    %494 = vmatprep.subr.mxu0 0.0
    %495 = vmatpush1.msra.mxu0 0.0
    %496 = vmatprep.subr.mxu0 0.0
    %497 = vmatpush1.msra.mxu0 0.0
    %498 = vmatprep.subr.mxu0 0.0
    %499 = vmatpush1.msra.mxu0 0.0
    %500 = vmatprep.subr.mxu0 0.0
    %501 = vmatpush1.msra.mxu0 0.0
    %502 = vmatprep.subr.mxu0 0.0
    %503 = vmatpush1.msra.mxu0 0.0
    %504 = vmatprep.subr.mxu0 0.0
    %505 = vmatpush1.msra.mxu0 0.0
    %506 = vmatprep.subr.mxu0 0.0
    %507 = vmatpush1.msra.mxu0 0.0
    %508 = vmatprep.subr.mxu0 0.0
    %509 = vmatpush1.msra.mxu0 0.0
    %510 = vmatprep.subr.mxu0 0.0
    %511 = vmatpush1.msra.mxu0 0.0
    %512 = vmatprep.subr.mxu0 0.0
    %513 = vmatpush1.msra.mxu0 0.0
    %514 = vmatprep.subr.mxu0 0.0
    %515 = vmatpush1.msra.mxu0 0.0
    %516 = vmatprep.subr.mxu0 0.0
    %517 = vmatpush1.msra.mxu0 0.0
    %518 = vmatprep.subr.mxu0 0.0
    %519 = vmatpush1.msra.mxu0 0.0
    %520 = vmatprep.subr.mxu0 0.0
    %521 = vmatpush1.msra.mxu0 0.0
    %522 = vmatprep.mubr.f32.mxu0 0.0
    %523 = vmatmul.mubr.f32.gmra.mrb[0].mxu0 %v456
    %v524 = vpop.f32.mrb[0].mxu0
    %v525 = vadd.f32 %v25, %v524
    %v526 = vpop.f32.mrb[0].mxu0
    %527 = vdwg.mxu0
    %v528 = vld [vmem:[%s3] sm:$0xff]
    %v529 = vld [vmem:[%s3 + $0x8] sm:$0xff]
    %v530 = vld [vmem:[%s3 + $0x10] sm:$0xff]
    %v531 = vld [vmem:[%s3 + $0x18] sm:$0xff]
    %v532 = vld [vmem:[%s3 + $0x20] sm:$0xff]
    %v533 = vld [vmem:[%s3 + $0x28] sm:$0xff]
    %v534 = vld [vmem:[%s3 + $0x30] sm:$0xff]
    %v535 = vld [vmem:[%s3 + $0x38] sm:$0xff]
    %v536 = vld [vmem:[%s3 + $0x40] sm:$0xff]
    %v537 = vld [vmem:[%s3 + $0x48] sm:$0xff]
    %v538 = vld [vmem:[%s3 + $0x50] sm:$0xff]
    %v539 = vld [vmem:[%s3 + $0x58] sm:$0xff]
    %v540 = vld [vmem:[%s3 + $0x60] sm:$0xff]
    %v541 = vld [vmem:[%s3 + $0x68] sm:$0xff]
    %v542 = vld [vmem:[%s3 + $0x70] sm:$0xff]
    %v543 = vld [vmem:[%s3 + $0x78] sm:$0xff]
    %v544 = vld [vmem:[%s1] sm:$0xff]
    %v545 = vld [vmem:[%s3 + $0x80] sm:$0xff]
    %v546 = vld [vmem:[%s3 + $0x88] sm:$0xff]
    %v547 = vld [vmem:[%s3 + $0x90] sm:$0xff]
    %v548 = vld [vmem:[%s3 + $0x98] sm:$0xff]
    %v549 = vld [vmem:[%s3 + $0xa0] sm:$0xff]
    %v550 = vld [vmem:[%s3 + $0xa8] sm:$0xff]
    %v551 = vld [vmem:[%s3 + $0xb0] sm:$0xff]
    %v552 = vld [vmem:[%s3 + $0xb8] sm:$0xff]
    %vm553 = vcmask 130048
    %v555 = vsel %vm553, %v544, 0
    %557 = vmatprep.subr.mxu0 %v546
    %558 = vmatpush1.msra.mxu0 %v545
    %559 = vmatprep.subr.mxu0 %v550
    %560 = vmatpush1.msra.mxu0 %v549
    %561 = vmatprep.subr.mxu0 0.0
    %562 = vmatpush1.msra.mxu0 0.0
    %563 = vmatprep.subr.mxu0 0.0
    %564 = vmatpush1.msra.mxu0 0.0
    %565 = vmatprep.subr.mxu0 0.0
    %566 = vmatpush1.msra.mxu0 0.0
    %567 = vmatprep.subr.mxu0 0.0
    %568 = vmatpush1.msra.mxu0 0.0
    %569 = vmatprep.subr.mxu0 0.0
    %570 = vmatpush1.msra.mxu0 0.0
    %571 = vmatprep.subr.mxu0 0.0
    %572 = vmatpush1.msra.mxu0 0.0
    %573 = vmatprep.subr.mxu0 0.0
    %574 = vmatpush1.msra.mxu0 0.0
    %575 = vmatprep.subr.mxu0 0.0
    %576 = vmatpush1.msra.mxu0 0.0
    %577 = vmatprep.subr.mxu0 0.0
    %578 = vmatpush1.msra.mxu0 0.0
    %579 = vmatprep.subr.mxu0 0.0
    %580 = vmatpush1.msra.mxu0 0.0
    %581 = vmatprep.subr.mxu0 0.0
    %582 = vmatpush1.msra.mxu0 0.0
    %583 = vmatprep.subr.mxu0 0.0
    %584 = vmatpush1.msra.mxu0 0.0
    %585 = vmatprep.subr.mxu0 0.0
    %586 = vmatpush1.msra.mxu0 0.0
    %587 = vmatprep.subr.mxu0 0.0
    %588 = vmatpush1.msra.mxu0 0.0
    %589 = vmatprep.subr.mxu0 0.0
    %590 = vmatpush1.msra.mxu0 0.0
    %591 = vmatprep.subr.mxu0 0.0
    %592 = vmatpush1.msra.mxu0 0.0
    %593 = vmatprep.subr.mxu0 0.0
    %594 = vmatpush1.msra.mxu0 0.0
    %595 = vmatprep.subr.mxu0 0.0
    %596 = vmatpush1.msra.mxu0 0.0
    %597 = vmatprep.subr.mxu0 0.0
    %598 = vmatpush1.msra.mxu0 0.0
    %599 = vmatprep.subr.mxu0 0.0
    %600 = vmatpush1.msra.mxu0 0.0
    %601 = vmatprep.subr.mxu0 0.0
    %602 = vmatpush1.msra.mxu0 0.0
    %603 = vmatprep.subr.mxu0 0.0
    %604 = vmatpush1.msra.mxu0 0.0
    %605 = vmatprep.subr.mxu0 0.0
    %606 = vmatpush1.msra.mxu0 0.0
    %607 = vmatprep.subr.mxu0 0.0
    %608 = vmatpush1.msra.mxu0 0.0
    %609 = vmatprep.subr.mxu0 0.0
    %610 = vmatpush1.msra.mxu0 0.0
    %611 = vmatprep.subr.mxu0 0.0
    %612 = vmatpush1.msra.mxu0 0.0
    %613 = vmatprep.subr.mxu0 0.0
    %614 = vmatpush1.msra.mxu0 0.0
    %615 = vmatprep.subr.mxu0 0.0
    %616 = vmatpush1.msra.mxu0 0.0
    %617 = vmatprep.subr.mxu0 0.0
    %618 = vmatpush1.msra.mxu0 0.0
    %619 = vmatprep.subr.mxu0 0.0
    %620 = vmatpush1.msra.mxu0 0.0
    %621 = vmatprep.mubr.f32.mxu0 0.0
    %622 = vmatmul.mubr.f32.gmra.mrb[0].mxu0 %v555
    %v623 = vpop.f32.mrb[0].mxu0
    %v624 = vadd.f32 0.0, %v623
    %v625 = vpop.f32.mrb[0].mxu0
    %v626 = vadd.f32 0.0, %v625
    %627 = vdwg.mxu0
    %628 = vmatprep.subr.mxu0 %v548
    %629 = vmatpush1.msra.mxu0 %v547
    %630 = vmatprep.subr.mxu0 %v552
    %631 = vmatpush1.msra.mxu0 %v551
    %632 = vmatprep.subr.mxu0 0.0
    %633 = vmatpush1.msra.mxu0 0.0
    %634 = vmatprep.subr.mxu0 0.0
    %635 = vmatpush1.msra.mxu0 0.0
    %636 = vmatprep.subr.mxu0 0.0
    %637 = vmatpush1.msra.mxu0 0.0
    %638 = vmatprep.subr.mxu0 0.0
    %639 = vmatpush1.msra.mxu0 0.0
    %640 = vmatprep.subr.mxu0 0.0
    %641 = vmatpush1.msra.mxu0 0.0
    %642 = vmatprep.subr.mxu0 0.0
    %643 = vmatpush1.msra.mxu0 0.0
    %644 = vmatprep.subr.mxu0 0.0
    %645 = vmatpush1.msra.mxu0 0.0
    %646 = vmatprep.subr.mxu0 0.0
    %647 = vmatpush1.msra.mxu0 0.0
    %648 = vmatprep.subr.mxu0 0.0
    %649 = vmatpush1.msra.mxu0 0.0
    %650 = vmatprep.subr.mxu0 0.0
    %651 = vmatpush1.msra.mxu0 0.0
    %652 = vmatprep.subr.mxu0 0.0
    %653 = vmatpush1.msra.mxu0 0.0
    %654 = vmatprep.subr.mxu0 0.0
    %655 = vmatpush1.msra.mxu0 0.0
    %656 = vmatprep.subr.mxu0 0.0
    %657 = vmatpush1.msra.mxu0 0.0
    %658 = vmatprep.subr.mxu0 0.0
    %659 = vmatpush1.msra.mxu0 0.0
    %660 = vmatprep.subr.mxu0 0.0
    %661 = vmatpush1.msra.mxu0 0.0
    %662 = vmatprep.subr.mxu0 0.0
    %663 = vmatpush1.msra.mxu0 0.0
    %664 = vmatprep.subr.mxu0 0.0
    %665 = vmatpush1.msra.mxu0 0.0
    %666 = vmatprep.subr.mxu0 0.0
    %667 = vmatpush1.msra.mxu0 0.0
    %668 = vmatprep.subr.mxu0 0.0
    %669 = vmatpush1.msra.mxu0 0.0
    %670 = vmatprep.subr.mxu0 0.0
    %671 = vmatpush1.msra.mxu0 0.0
    %672 = vmatprep.subr.mxu0 0.0
    %673 = vmatpush1.msra.mxu0 0.0
    %674 = vmatprep.subr.mxu0 0.0
    %675 = vmatpush1.msra.mxu0 0.0
    %676 = vmatprep.subr.mxu0 0.0
    %677 = vmatpush1.msra.mxu0 0.0
    %678 = vmatprep.subr.mxu0 0.0
    %679 = vmatpush1.msra.mxu0 0.0
    %680 = vmatprep.subr.mxu0 0.0
    %681 = vmatpush1.msra.mxu0 0.0
    %682 = vmatprep.subr.mxu0 0.0
    %683 = vmatpush1.msra.mxu0 0.0
    %684 = vmatprep.subr.mxu0 0.0
    %685 = vmatpush1.msra.mxu0 0.0
    %686 = vmatprep.subr.mxu0 0.0
    %687 = vmatpush1.msra.mxu0 0.0
    %688 = vmatprep.subr.mxu0 0.0
    %689 = vmatpush1.msra.mxu0 0.0
    %690 = vmatprep.subr.mxu0 0.0
    %691 = vmatpush1.msra.mxu0 0.0
    %692 = vmatprep.mubr.f32.mxu0 0.0
    %693 = vmatmul.mubr.f32.gmra.mrb[0].mxu0 %v555
    %v694 = vpop.f32.mrb[0].mxu0
    %v695 = vadd.f32 0.0, %v694
    %v696 = vpop.f32.mrb[0].mxu0
    %v697 = vadd.f32 0.0, %v696
    %698 = vdwg.mxu0
    %vm699 = vcmask 261120
    %v701 = vsel %vm699, %v525, 0
    %703 = vmatprep.subr.mxu0 %v529
    %704 = vmatpush1.msra.mxu0 %v528
    %705 = vmatprep.subr.mxu0 %v533
    %706 = vmatpush1.msra.mxu0 %v532
    %707 = vmatprep.subr.mxu0 %v537
    %708 = vmatpush1.msra.mxu0 %v536
    %709 = vmatprep.subr.mxu0 %v541
    %710 = vmatpush1.msra.mxu0 %v540
    %711 = vmatprep.subr.mxu0 0.0
    %712 = vmatpush1.msra.mxu0 0.0
    %713 = vmatprep.subr.mxu0 0.0
    %714 = vmatpush1.msra.mxu0 0.0
    %715 = vmatprep.subr.mxu0 0.0
    %716 = vmatpush1.msra.mxu0 0.0
    %717 = vmatprep.subr.mxu0 0.0
    %718 = vmatpush1.msra.mxu0 0.0
    %719 = vmatprep.subr.mxu0 0.0
    %720 = vmatpush1.msra.mxu0 0.0
    %721 = vmatprep.subr.mxu0 0.0
    %722 = vmatpush1.msra.mxu0 0.0
    %723 = vmatprep.subr.mxu0 0.0
    %724 = vmatpush1.msra.mxu0 0.0
    %725 = vmatprep.subr.mxu0 0.0
    %726 = vmatpush1.msra.mxu0 0.0
    %727 = vmatprep.subr.mxu0 0.0
    %728 = vmatpush1.msra.mxu0 0.0
    %729 = vmatprep.subr.mxu0 0.0
    %730 = vmatpush1.msra.mxu0 0.0
    %731 = vmatprep.subr.mxu0 0.0
    %732 = vmatpush1.msra.mxu0 0.0
    %733 = vmatprep.subr.mxu0 0.0
    %734 = vmatpush1.msra.mxu0 0.0
    %735 = vmatprep.subr.mxu0 0.0
    %736 = vmatpush1.msra.mxu0 0.0
    %737 = vmatprep.subr.mxu0 0.0
    %738 = vmatpush1.msra.mxu0 0.0
    %739 = vmatprep.subr.mxu0 0.0
    %740 = vmatpush1.msra.mxu0 0.0
    %741 = vmatprep.subr.mxu0 0.0
    %742 = vmatpush1.msra.mxu0 0.0
    %743 = vmatprep.subr.mxu0 0.0
    %744 = vmatpush1.msra.mxu0 0.0
    %745 = vmatprep.subr.mxu0 0.0
    %746 = vmatpush1.msra.mxu0 0.0
    %747 = vmatprep.subr.mxu0 0.0
    %748 = vmatpush1.msra.mxu0 0.0
    %749 = vmatprep.subr.mxu0 0.0
    %750 = vmatpush1.msra.mxu0 0.0
    %751 = vmatprep.subr.mxu0 0.0
    %752 = vmatpush1.msra.mxu0 0.0
    %753 = vmatprep.subr.mxu0 0.0
    %754 = vmatpush1.msra.mxu0 0.0
    %755 = vmatprep.subr.mxu0 0.0
    %756 = vmatpush1.msra.mxu0 0.0
    %757 = vmatprep.subr.mxu0 0.0
    %758 = vmatpush1.msra.mxu0 0.0
    %759 = vmatprep.subr.mxu0 0.0
    %760 = vmatpush1.msra.mxu0 0.0
    %761 = vmatprep.subr.mxu0 0.0
    %762 = vmatpush1.msra.mxu0 0.0
    %763 = vmatprep.subr.mxu0 0.0
    %764 = vmatpush1.msra.mxu0 0.0
    %765 = vmatprep.subr.mxu0 0.0
    %766 = vmatpush1.msra.mxu0 0.0
    %767 = vmatprep.mubr.f32.mxu0 0.0
    %768 = vmatmul.mubr.f32.gmra.mrb[0].mxu0 %v701
    %v769 = vpop.f32.mrb[0].mxu0
    %v770 = vadd.f32 %v624, %v769
    %v771 = vpop.f32.mrb[0].mxu0
    %v772 = vadd.f32 %v626, %v771
    %773 = vdwg.mxu0
    %774 = vmatprep.subr.mxu0 %v531
    %775 = vmatpush1.msra.mxu0 %v530
    %776 = vmatprep.subr.mxu0 %v535
    %777 = vmatpush1.msra.mxu0 %v534
    %778 = vmatprep.subr.mxu0 %v539
    %779 = vmatpush1.msra.mxu0 %v538
    %780 = vmatprep.subr.mxu0 %v543
    %781 = vmatpush1.msra.mxu0 %v542
    %782 = vmatprep.subr.mxu0 0.0
    %783 = vmatpush1.msra.mxu0 0.0
    %784 = vmatprep.subr.mxu0 0.0
    %785 = vmatpush1.msra.mxu0 0.0
    %786 = vmatprep.subr.mxu0 0.0
    %787 = vmatpush1.msra.mxu0 0.0
    %788 = vmatprep.subr.mxu0 0.0
    %789 = vmatpush1.msra.mxu0 0.0
    %790 = vmatprep.subr.mxu0 0.0
    %791 = vmatpush1.msra.mxu0 0.0
    %792 = vmatprep.subr.mxu0 0.0
    %793 = vmatpush1.msra.mxu0 0.0
    %794 = vmatprep.subr.mxu0 0.0
    %795 = vmatpush1.msra.mxu0 0.0
    %796 = vmatprep.subr.mxu0 0.0
    %797 = vmatpush1.msra.mxu0 0.0
    %798 = vmatprep.subr.mxu0 0.0
    %799 = vmatpush1.msra.mxu0 0.0
    %800 = vmatprep.subr.mxu0 0.0
    %801 = vmatpush1.msra.mxu0 0.0
    %802 = vmatprep.subr.mxu0 0.0
    %803 = vmatpush1.msra.mxu0 0.0
    %804 = vmatprep.subr.mxu0 0.0
    %805 = vmatpush1.msra.mxu0 0.0
    %806 = vmatprep.subr.mxu0 0.0
    %807 = vmatpush1.msra.mxu0 0.0
    %808 = vmatprep.subr.mxu0 0.0
    %809 = vmatpush1.msra.mxu0 0.0
    %810 = vmatprep.subr.mxu0 0.0
    %811 = vmatpush1.msra.mxu0 0.0
    %812 = vmatprep.subr.mxu0 0.0
    %813 = vmatpush1.msra.mxu0 0.0
    %814 = vmatprep.subr.mxu0 0.0
    %815 = vmatpush1.msra.mxu0 0.0
    %816 = vmatprep.subr.mxu0 0.0
    %817 = vmatpush1.msra.mxu0 0.0
    %818 = vmatprep.subr.mxu0 0.0
    %819 = vmatpush1.msra.mxu0 0.0
    %820 = vmatprep.subr.mxu0 0.0
    %821 = vmatpush1.msra.mxu0 0.0
    %822 = vmatprep.subr.mxu0 0.0
    %823 = vmatpush1.msra.mxu0 0.0
    %824 = vmatprep.subr.mxu0 0.0
    %825 = vmatpush1.msra.mxu0 0.0
    %826 = vmatprep.subr.mxu0 0.0
    %827 = vmatpush1.msra.mxu0 0.0
    %828 = vmatprep.subr.mxu0 0.0
    %829 = vmatpush1.msra.mxu0 0.0
    %830 = vmatprep.subr.mxu0 0.0
    %831 = vmatpush1.msra.mxu0 0.0
    %832 = vmatprep.subr.mxu0 0.0
    %833 = vmatpush1.msra.mxu0 0.0
    %834 = vmatprep.subr.mxu0 0.0
    %835 = vmatpush1.msra.mxu0 0.0
    %836 = vmatprep.subr.mxu0 0.0
    %837 = vmatpush1.msra.mxu0 0.0
    %838 = vmatprep.mubr.f32.mxu0 0.0
    %839 = vmatmul.mubr.f32.gmra.mrb[0].mxu0 %v701
    %v840 = vpop.f32.mrb[0].mxu0
    %v841 = vadd.f32 %v695, %v840
    %v842 = vpop.f32.mrb[0].mxu0
    %v843 = vadd.f32 %v697, %v842
    %844 = vdwg.mxu0
    %v846 = vlaneseq
    %v847 = vshrl.u32 %v846, 7
    %v848 = vsub.s32 0, %v847
    %v849 = vrot.slane %v27, %v848
    %v850 = vlaneseq
    %v851 = vshrl.u32 %v850, 7
    %v852 = vsub.s32 1, %v851
    %v853 = vrot.slane %v27, %v852
    %v854 = vlaneseq
    %v855 = vshrl.u32 %v854, 7
    %v856 = vsub.s32 2, %v855
    %v857 = vrot.slane %v27, %v856
    %v858 = vlaneseq
    %v859 = vshrl.u32 %v858, 7
    %v860 = vsub.s32 3, %v859
    %v861 = vrot.slane %v27, %v860
    %v866 = vadd.f32 %v770, %v849
    %v867 = vadd.f32 %v772, %v853
    %v868 = vadd.f32 %v841, %v857
    %v869 = vadd.f32 %v843, %v861
    %v870 = vmax.f32 %v866, 0.0
    %v871 = vmax.f32 %v867, 0.0
    %v872 = vmax.f32 %v868, 0.0
    %v873 = vmax.f32 %v869, 0.0
    %v874 = vld [vmem:[%s4] sm:$0xff]
    %v875 = vld [vmem:[%s4 + $0x8] sm:$0xff]
    %v876 = vld [vmem:[%s4 + $0x10] sm:$0xff]
    %v877 = vld [vmem:[%s4 + $0x18] sm:$0xff]
    %v878 = vld [vmem:[%s4 + $0x20] sm:$0xff]
    %v879 = vld [vmem:[%s4 + $0x28] sm:$0xff]
    %v880 = vld [vmem:[%s4 + $0x30] sm:$0xff]
    %v881 = vld [vmem:[%s4 + $0x38] sm:$0xff]
    %v882 = vld [vmem:[%s4 + $0x40] sm:$0xff]
    %v883 = vld [vmem:[%s4 + $0x48] sm:$0xff]
    %v884 = vld [vmem:[%s4 + $0x50] sm:$0xff]
    %v885 = vld [vmem:[%s4 + $0x58] sm:$0xff]
    %v886 = vld [vmem:[%s4 + $0x60] sm:$0xff]
    %v887 = vld [vmem:[%s4 + $0x68] sm:$0xff]
    %v888 = vld [vmem:[%s4 + $0x70] sm:$0xff]
    %v889 = vld [vmem:[%s4 + $0x78] sm:$0xff]
    %v890 = vld [vmem:[%s4 + $0x80] sm:$0xff]
    %v891 = vld [vmem:[%s4 + $0x88] sm:$0xff]
    %v892 = vld [vmem:[%s4 + $0x90] sm:$0xff]
    %v893 = vld [vmem:[%s4 + $0x98] sm:$0xff]
    %v894 = vld [vmem:[%s4 + $0xa0] sm:$0xff]
    %v895 = vld [vmem:[%s4 + $0xa8] sm:$0xff]
    %v896 = vld [vmem:[%s4 + $0xb0] sm:$0xff]
    %v897 = vld [vmem:[%s4 + $0xb8] sm:$0xff]
    %v898 = vld [vmem:[%s4 + $0xc0] sm:$0xff]
    %v899 = vld [vmem:[%s4 + $0xc8] sm:$0xff]
    %v900 = vld [vmem:[%s4 + $0xd0] sm:$0xff]
    %v901 = vld [vmem:[%s4 + $0xd8] sm:$0xff]
    %v902 = vld [vmem:[%s4 + $0xe0] sm:$0xff]
    %v903 = vld [vmem:[%s4 + $0xe8] sm:$0xff]
    %v904 = vld [vmem:[%s4 + $0xf0] sm:$0xff]
    %v905 = vld [vmem:[%s4 + $0xf8] sm:$0xff]
    %v906 = vld [vmem:[%s4 + $0x100] sm:$0xff]
    %v907 = vld [vmem:[%s4 + $0x108] sm:$0xff]
    %v908 = vld [vmem:[%s4 + $0x110] sm:$0xff]
    %v909 = vld [vmem:[%s4 + $0x118] sm:$0xff]
    %v910 = vld [vmem:[%s4 + $0x120] sm:$0xff]
    %v911 = vld [vmem:[%s4 + $0x128] sm:$0xff]
    %v912 = vld [vmem:[%s4 + $0x130] sm:$0xff]
    %v913 = vld [vmem:[%s4 + $0x138] sm:$0xff]
    %v914 = vld [vmem:[%s4 + $0x140] sm:$0xff]
    %v915 = vld [vmem:[%s4 + $0x148] sm:$0xff]
    %v916 = vld [vmem:[%s4 + $0x150] sm:$0xff]
    %v917 = vld [vmem:[%s4 + $0x158] sm:$0xff]
    %v918 = vld [vmem:[%s4 + $0x160] sm:$0xff]
    %v919 = vld [vmem:[%s4 + $0x168] sm:$0xff]
    %v920 = vld [vmem:[%s4 + $0x170] sm:$0xff]
    %v921 = vld [vmem:[%s4 + $0x178] sm:$0xff]
    %v922 = vld [vmem:[%s4 + $0x180] sm:$0xff]
    %v923 = vld [vmem:[%s4 + $0x188] sm:$0xff]
    %v924 = vld [vmem:[%s4 + $0x190] sm:$0xff]
    %v925 = vld [vmem:[%s4 + $0x198] sm:$0xff]
    %v926 = vld [vmem:[%s4 + $0x1a0] sm:$0xff]
    %v927 = vld [vmem:[%s4 + $0x1a8] sm:$0xff]
    %v928 = vld [vmem:[%s4 + $0x1b0] sm:$0xff]
    %v929 = vld [vmem:[%s4 + $0x1b8] sm:$0xff]
    %v930 = vld [vmem:[%s4 + $0x1c0] sm:$0xff]
    %v931 = vld [vmem:[%s4 + $0x1c8] sm:$0xff]
    %v932 = vld [vmem:[%s4 + $0x1d0] sm:$0xff]
    %v933 = vld [vmem:[%s4 + $0x1d8] sm:$0xff]
    %v934 = vld [vmem:[%s4 + $0x1e0] sm:$0xff]
    %v935 = vld [vmem:[%s4 + $0x1e8] sm:$0xff]
    %v936 = vld [vmem:[%s4 + $0x1f0] sm:$0xff]
    %v937 = vld [vmem:[%s4 + $0x1f8] sm:$0xff]
    %938 = vmatprep.subr.mxu0 0.0
    %939 = vmatpush1.msra.mxu0 %v874
    %940 = vmatprep.subr.mxu0 0.0
    %941 = vmatpush1.msra.mxu0 %v875
    %942 = vmatprep.subr.mxu0 0.0
    %943 = vmatpush1.msra.mxu0 %v876
    %944 = vmatprep.subr.mxu0 0.0
    %945 = vmatpush1.msra.mxu0 %v877
    %946 = vmatprep.subr.mxu0 0.0
    %947 = vmatpush1.msra.mxu0 %v878
    %948 = vmatprep.subr.mxu0 0.0
    %949 = vmatpush1.msra.mxu0 %v879
    %950 = vmatprep.subr.mxu0 0.0
    %951 = vmatpush1.msra.mxu0 %v880
    %952 = vmatprep.subr.mxu0 0.0
    %953 = vmatpush1.msra.mxu0 %v881
    %954 = vmatprep.subr.mxu0 0.0
    %955 = vmatpush1.msra.mxu0 %v882
    %956 = vmatprep.subr.mxu0 0.0
    %957 = vmatpush1.msra.mxu0 %v883
    %958 = vmatprep.subr.mxu0 0.0
    %959 = vmatpush1.msra.mxu0 %v884
    %960 = vmatprep.subr.mxu0 0.0
    %961 = vmatpush1.msra.mxu0 %v885
    %962 = vmatprep.subr.mxu0 0.0
    %963 = vmatpush1.msra.mxu0 %v886
    %964 = vmatprep.subr.mxu0 0.0
    %965 = vmatpush1.msra.mxu0 %v887
    %966 = vmatprep.subr.mxu0 0.0
    %967 = vmatpush1.msra.mxu0 %v888
    %968 = vmatprep.subr.mxu0 0.0
    %969 = vmatpush1.msra.mxu0 %v889
    %970 = vmatprep.subr.mxu0 0.0
    %971 = vmatpush1.msra.mxu0 %v890
    %972 = vmatprep.subr.mxu0 0.0
    %973 = vmatpush1.msra.mxu0 %v891
    %974 = vmatprep.subr.mxu0 0.0
    %975 = vmatpush1.msra.mxu0 %v892
    %976 = vmatprep.subr.mxu0 0.0
    %977 = vmatpush1.msra.mxu0 %v893
    %978 = vmatprep.subr.mxu0 0.0
    %979 = vmatpush1.msra.mxu0 %v894
    %980 = vmatprep.subr.mxu0 0.0
    %981 = vmatpush1.msra.mxu0 %v895
    %982 = vmatprep.subr.mxu0 0.0
    %983 = vmatpush1.msra.mxu0 %v896
    %984 = vmatprep.subr.mxu0 0.0
    %985 = vmatpush1.msra.mxu0 %v897
    %986 = vmatprep.subr.mxu0 0.0
    %987 = vmatpush1.msra.mxu0 %v898
    %988 = vmatprep.subr.mxu0 0.0
    %989 = vmatpush1.msra.mxu0 %v899
    %990 = vmatprep.subr.mxu0 0.0
    %991 = vmatpush1.msra.mxu0 %v900
    %992 = vmatprep.subr.mxu0 0.0
    %993 = vmatpush1.msra.mxu0 %v901
    %994 = vmatprep.subr.mxu0 0.0
    %995 = vmatpush1.msra.mxu0 %v902
    %996 = vmatprep.subr.mxu0 0.0
    %997 = vmatpush1.msra.mxu0 %v903
    %998 = vmatprep.subr.mxu0 0.0
    %999 = vmatpush1.msra.mxu0 %v904
    %1000 = vmatprep.subr.mxu0 0.0
    %1001 = vmatpush1.msra.mxu0 %v905
    %1002 = vmatprep.mubr.f32.mxu0 %v871
    %1003 = vmatmul.mubr.f32.gmra.mrb[0].mxu0 %v870
    %v1004 = vpop.f32.mrb[0].mxu0
    %v1005 = vadd.f32 %v28, %v1004
    %v1006 = vpop.f32.mrb[0].mxu0
    %1007 = vdwg.mxu0
    %1008 = vmatprep.subr.mxu0 0.0
    %1009 = vmatpush1.msra.mxu0 %v906
    %1010 = vmatprep.subr.mxu0 0.0
    %1011 = vmatpush1.msra.mxu0 %v907
    %1012 = vmatprep.subr.mxu0 0.0
    %1013 = vmatpush1.msra.mxu0 %v908
    %1014 = vmatprep.subr.mxu0 0.0
    %1015 = vmatpush1.msra.mxu0 %v909
    %1016 = vmatprep.subr.mxu0 0.0
    %1017 = vmatpush1.msra.mxu0 %v910
    %1018 = vmatprep.subr.mxu0 0.0
    %1019 = vmatpush1.msra.mxu0 %v911
    %1020 = vmatprep.subr.mxu0 0.0
    %1021 = vmatpush1.msra.mxu0 %v912
    %1022 = vmatprep.subr.mxu0 0.0
    %1023 = vmatpush1.msra.mxu0 %v913
    %1024 = vmatprep.subr.mxu0 0.0
    %1025 = vmatpush1.msra.mxu0 %v914
    %1026 = vmatprep.subr.mxu0 0.0
    %1027 = vmatpush1.msra.mxu0 %v915
    %1028 = vmatprep.subr.mxu0 0.0
    %1029 = vmatpush1.msra.mxu0 %v916
    %1030 = vmatprep.subr.mxu0 0.0
    %1031 = vmatpush1.msra.mxu0 %v917
    %1032 = vmatprep.subr.mxu0 0.0
    %1033 = vmatpush1.msra.mxu0 %v918
    %1034 = vmatprep.subr.mxu0 0.0
    %1035 = vmatpush1.msra.mxu0 %v919
    %1036 = vmatprep.subr.mxu0 0.0
    %1037 = vmatpush1.msra.mxu0 %v920
    %1038 = vmatprep.subr.mxu0 0.0
    %1039 = vmatpush1.msra.mxu0 %v921
    %1040 = vmatprep.subr.mxu0 0.0
    %1041 = vmatpush1.msra.mxu0 %v922
    %1042 = vmatprep.subr.mxu0 0.0
    %1043 = vmatpush1.msra.mxu0 %v923
    %1044 = vmatprep.subr.mxu0 0.0
    %1045 = vmatpush1.msra.mxu0 %v924
    %1046 = vmatprep.subr.mxu0 0.0
    %1047 = vmatpush1.msra.mxu0 %v925
    %1048 = vmatprep.subr.mxu0 0.0
    %1049 = vmatpush1.msra.mxu0 %v926
    %1050 = vmatprep.subr.mxu0 0.0
    %1051 = vmatpush1.msra.mxu0 %v927
    %1052 = vmatprep.subr.mxu0 0.0
    %1053 = vmatpush1.msra.mxu0 %v928
    %1054 = vmatprep.subr.mxu0 0.0
    %1055 = vmatpush1.msra.mxu0 %v929
    %1056 = vmatprep.subr.mxu0 0.0
    %1057 = vmatpush1.msra.mxu0 %v930
    %1058 = vmatprep.subr.mxu0 0.0
    %1059 = vmatpush1.msra.mxu0 %v931
    %1060 = vmatprep.subr.mxu0 0.0
    %1061 = vmatpush1.msra.mxu0 %v932
    %1062 = vmatprep.subr.mxu0 0.0
    %1063 = vmatpush1.msra.mxu0 %v933
    %1064 = vmatprep.subr.mxu0 0.0
    %1065 = vmatpush1.msra.mxu0 %v934
    %1066 = vmatprep.subr.mxu0 0.0
    %1067 = vmatpush1.msra.mxu0 %v935
    %1068 = vmatprep.subr.mxu0 0.0
    %1069 = vmatpush1.msra.mxu0 %v936
    %1070 = vmatprep.subr.mxu0 0.0
    %1071 = vmatpush1.msra.mxu0 %v937
    %1072 = vmatprep.mubr.f32.mxu0 %v873
    %1073 = vmatmul.mubr.f32.gmra.mrb[0].mxu0 %v872
    %v1074 = vpop.f32.mrb[0].mxu0
    %v1075 = vadd.f32 %v1005, %v1074
    %v1076 = vpop.f32.mrb[0].mxu0
    %1077 = vdwg.mxu0
    %1078 = vst [vmem:[#allocation2] sm:$0xff] %v1075
    // Predicated region
    $region26: #{tpu_custom_call.1} parent=1 // pred_check
      _
    $region27: #{tpu_custom_call.1} parent=1 // pred_check_branch
      %1080 = sbr.rel (0) target = $region29
    $region28: #{tpu_custom_call.1} parent=1 // pred_region
      %s1082 = ssub.s32 128, 128
      %1083 = vsyncadd [#allocation3], %s1082
      %s1085 = sshll.u32 [#allocation2], 4
      %s1086 = int_to_ptr.vmem [resolvable:$true] %s1085
      %1088 = dma.vmem_to_hbm [thread:$0]  %s1086, 128, %s6, [#allocation3]
    $region29: #{tpu_custom_call.1} parent=1 // pred_fallthru
      _
    // Predicated region
    $region30: #{tpu_custom_call.1} parent=1 // pred_check
      _
    $region31: #{tpu_custom_call.1} parent=1 // pred_check_branch
      %1090 = sbr.rel (0) target = $region33
    $region32: #{tpu_custom_call.1} parent=1 // pred_region
      %1091 = dma.done [#allocation3], 128
    $region33: #{tpu_custom_call.1} parent=1 // pred_fallthru
      _
    %1092 = vsyncpa [#allocation3], 1

</llo_original>
